<compile_context>
chip_gen: v6e
topology: v6e:2x2x1
jax: 0.10.0
libtpu: 0.0.40
codegen_flags: <defaults>
</compile_context>

<pallas_src>
import math
from functools import partial

import jax
import jax.numpy as jnp
from jax import lax
from jax.experimental import pallas as pl
from jax.experimental.pallas import tpu as pltpu


def _round_up(x, mult):
    return ((x + mult - 1) // mult) * mult


def _coset_sum(x, G, k):
    """Per-batch segment sum over the lane axis of a (1, G*k) vector.

    Lanes are laid out interleaved: lane = c*G + b (b = batch-in-group, c = 0..k-1),
    so batch b owns the lanes congruent to b (mod G).  A mixed-radix butterfly of
    pltpu.roll rotations by multiples of G covers every multiple-of-G offset exactly
    once, so EVERY lane ends up holding its own batch's total -- no masks, no MXU,
    no reshapes, and the result is independent of the roll direction convention.
    """
    s = x
    span, rem = 1, k
    while span < k:
        radix = 2 if rem % 2 == 0 else rem
        acc = s
        for j in range(1, radix):
            acc = acc + pltpu.roll(s, j * span * G, axis=1)
        s = acc
        span *= radix
        rem //= radix
    return s


# ----------------------------------------------------------------------------------
# Pallas kernel: SATNet mixing method, batch folded into lanes, MXU-free hot loop.
# ----------------------------------------------------------------------------------
def _mixing_kernel(max_iter, G, k,
                   order_sref, nfree_sref,
                   vinit_ref, winit_ref, c0_ref, fl_ref,
                   vout_ref, w_scr):
    """SATNet mixing-method forward for one group of G batch elements.

    order_sref : SMEM i32 (num_groups, N_pad)  free-variable indices first (compacted)
    nfree_sref : SMEM i32 (num_groups,)        number of free variables per group
    vinit_ref  : VMEM f32 (N_pad, G*k)  initial unit vectors, lane = c*G + b
    winit_ref  : VMEM f32 (N_pad, G*k)  C0 @ V_init, same lane layout (precomputed)
    c0_ref     : VMEM f32 (N_pad, N_pad)  S S^T with zeroed diagonal (shared, symmetric)
    fl_ref     : VMEM f32 (N_pad, G*k)  1.0 on lanes of free (variable, batch) pairs
    vout_ref   : VMEM f32 (N_pad, G*k)  final unit vectors (also the working copy)
    w_scr      : VMEM f32 (N_pad, G*k)  running W = C0 @ V (rank-1 updated)
    """
    g = pl.program_id(0)

    # V lives directly in the VMEM-resident output block (no separate V scratch).
    vout_ref[...] = vinit_ref[...]
    w_scr[...] = winit_ref[...]

    c0 = c0_ref[...]                                            # hoisted (small)
    n_pad = c0_ref.shape[0]
    col_iota = lax.broadcasted_iota(jnp.int32, (n_pad, n_pad), 1)   # hoisted
    n_free = nfree_sref[g]

    # ---- mixing sweeps (Gauss-Seidel coordinate descent) -------------------------
    # TODO(synk): reference SATNet visits free variables in a fresh random permutation
    # each sweep and early-stops on eps; here the order is fixed and the sweep count
    # is a constant max_iter.
    def update(t, carry):
        i = order_sref[g, t]                                    # SMEM scalar read
        gv = w_scr[pl.ds(i, 1), :]                              # g_i : (1, G*k) row read
        gsq = _coset_sum(gv * gv, G, k)                         # per-batch ||g||^2, XLU rolls
        v_new = -gv * lax.rsqrt(jnp.maximum(gsq, 1e-30))
        v_old = vout_ref[pl.ds(i, 1), :]
        fl = fl_ref[pl.ds(i, 1), :]
        # keep the old vector for fixed lanes and for degenerate (g ~ 0) gradients
        accept = (fl > 0.0) & (gsq > 1e-20)
        v_sel = jnp.where(accept, v_new, v_old)
        vout_ref[pl.ds(i, 1), :] = v_sel
        dv = v_sel - v_old                                      # zero on rejected lanes
        # rank-1 VPU fixup of W:  W[j, :] += C0[j, i] * dv   (C0 symmetric).
        # Column i of C0 is extracted as a sublane vector with an iota mask + lane
        # reduce (off the critical path; only ~N_pad^2 elements).
        ccol = jnp.sum(jnp.where(col_iota == i, c0, 0.0), axis=1, keepdims=True)
        w_scr[...] = w_scr[...] + ccol * dv
        return carry

    def sweep(_, carry):
        return lax.fori_loop(0, n_free, update, carry)

    lax.fori_loop(0, max_iter, sweep, 0)


def satnet_mixing(order, n_free, V_lanes, W_lanes, C0, free_lane, *,
                  max_iter, num_groups, N_pad, Gk, G, k):
    """Run the lane-batched mixing kernel.  Returns final V as (num_groups*N_pad, Gk)."""
    # TODO(synk): for production-sized N, mark C0 with pipeline_mode=pl.Buffered(1),
    # store it in bf16 and set vmem_limit_bytes (v7x has only 64 MiB VMEM).
    return pl.pallas_call(
        partial(_mixing_kernel, max_iter, G, k),
        out_shape=jax.ShapeDtypeStruct((num_groups * N_pad, Gk), jnp.float32),
        grid_spec=pltpu.PrefetchScalarGridSpec(
            num_scalar_prefetch=2,                      # order + n_free -> SMEM
            grid=(num_groups,),
            in_specs=[
                pl.BlockSpec((N_pad, Gk), lambda g, o, n: (g, 0)),      # V init
                pl.BlockSpec((N_pad, Gk), lambda g, o, n: (g, 0)),      # W init = C0 @ V
                pl.BlockSpec((N_pad, N_pad), lambda g, o, n: (0, 0)),   # C0 (shared)
                pl.BlockSpec((N_pad, Gk), lambda g, o, n: (g, 0)),      # free-lane mask
            ],
            out_specs=pl.BlockSpec((N_pad, Gk), lambda g, o, n: (g, 0)),
            scratch_shapes=[pltpu.VMEM((N_pad, Gk), jnp.float32)],      # W working copy
        ),
        compiler_params=pltpu.CompilerParams(dimension_semantics=("parallel",)),
    )(order, n_free, V_lanes, W_lanes, C0, free_lane)


# ----------------------------------------------------------------------------------
# SATNet(n, m, aux) forward in JAX + Pallas.
# ----------------------------------------------------------------------------------
def satnet_forward(S, z, is_input, *, aux, init_key, max_iter=40):
    """S: (n+1+aux, m) parameter; z: (B, n) in [0,1]; is_input: (B, n) int mask."""
    B, n = z.shape
    N = n + 1 + aux
    assert S.shape[0] == N

    # prepend truth variable (value 1, fixed) and append free auxiliary variables
    z_full = jnp.concatenate(
        [jnp.ones((B, 1), z.dtype), z, jnp.zeros((B, aux), z.dtype)], axis=1)
    is_full = jnp.concatenate(
        [jnp.ones((B, 1), jnp.int32), is_input.astype(jnp.int32),
         jnp.zeros((B, aux), jnp.int32)], axis=1)

    # Use the raw S parameter, as the reference SATNet mixing method does (the
    # previous per-clause column normalization was flagged as a correctness concern).
    # TODO(synk): verify against the reference whether any weight normalization is
    # applied to S before the mixing iterations.
    S_f = S.astype(jnp.float32)

    # rank of the SDP relaxation, rounded up to a multiple of 32 (as in SATNet)
    k = 32 * int(math.ceil((math.sqrt(N) + 1.0) / 32.0))

    # pad the variable axis to a sublane multiple; padded vars are fixed and get zero
    # clause rows, so they never influence real variables.
    N_pad = _round_up(N, 8)
    pad_n = N_pad - N
    S_pad = jnp.pad(S_f, ((0, pad_n), (0, 0)))
    z_pad = jnp.pad(z_full.astype(jnp.float32), ((0, 0), (0, pad_n)))
    is_pad = jnp.pad(is_full, ((0, 0), (0, pad_n)), constant_values=1)

    # clause Gram matrix with zero diagonal, hoisted OUT of the kernel (shared tile)
    C = S_pad @ S_pad.T
    C0 = (C * (1.0 - jnp.eye(N_pad, dtype=jnp.float32))).astype(jnp.float32)

    # random unit-vector initialization: fixed inputs at angle pi*z from the truth
    # direction e0, free variables at random unit vectors.
    R = jax.random.normal(init_key, (B, N_pad, k), dtype=jnp.float32)
    col0 = (jnp.arange(k) == 0)
    Rp = jnp.where(col0, 0.0, R)
    rp_norm = jnp.linalg.norm(Rp, axis=-1, keepdims=True) + 1e-12
    zc = z_pad[..., None]
    v_known = jnp.where(col0, -jnp.cos(math.pi * zc),
                        jnp.sin(math.pi * zc) * Rp / rp_norm)
    v_free = R / (jnp.linalg.norm(R, axis=-1, keepdims=True) + 1e-12)
    V_init = jnp.where(is_pad[..., None] > 0, v_known, v_free)          # (B, N_pad, k)

    # ---- group the batch into lanes: each group packs G batch elements into G*k
    # lanes with lane index = c*G + b (interleaved so per-batch sums are mod-G cosets).
    lane_cap = 512
    G = max(1, min(B, lane_cap // k)) if k <= lane_cap else 1
    num_groups = -(-B // G)
    if num_groups == 1 and B * k >= 2 * 128:
        # split into >= 2 groups (>=128 lanes each) so both v7x TensorCores get work
        G = -(-B // 2)
        num_groups = -(-B // G)
    B_pad = num_groups * G
    pad_b = B_pad - B
    Gk = G * k

    V_init_p = jnp.pad(V_init, ((0, pad_b), (0, 0), (0, 0)))
    is_pad_b = jnp.pad(is_pad, ((0, pad_b), (0, 0)), constant_values=1)  # padded batch = fixed

    # W = C0 @ V precomputed once in JAX (tiny); the kernel maintains it incrementally.
    W_init = jnp.einsum('ij,bjk->bik', C0, V_init_p)

    def to_lanes(x):  # (B_pad, N_pad, k) -> (num_groups * N_pad, G*k), lane = c*G + b
        return (x.reshape(num_groups, G, N_pad, k)
                 .transpose(0, 2, 3, 1)
                 .reshape(num_groups * N_pad, Gk))

    V_lanes = to_lanes(V_init_p).astype(jnp.float32)
    W_lanes = to_lanes(W_init).astype(jnp.float32)
    free_b = (is_pad_b == 0)                                             # (B_pad, N_pad)
    free_lane = to_lanes(jnp.broadcast_to(
        free_b[..., None].astype(jnp.float32), (B_pad, N_pad, k)))

    # compacted per-group free-variable list + count (scalar-prefetched to SMEM)
    free_any = free_b.reshape(num_groups, G, N_pad).any(axis=1)          # (num_groups, N_pad)
    n_free = free_any.sum(axis=1).astype(jnp.int32)                      # (num_groups,)
    order = jnp.argsort((~free_any).astype(jnp.int32), axis=1).astype(jnp.int32)

    v_out = satnet_mixing(order, n_free, V_lanes, W_lanes, C0, free_lane,
                          max_iter=max_iter, num_groups=num_groups,
                          N_pad=N_pad, Gk=Gk, G=G, k=k)

    # unfold lanes back to (B, N_pad, k) and read out v_i . v_truth (variable 0)
    V_final = (v_out.reshape(num_groups, N_pad, k, G)
                    .transpose(0, 3, 1, 2)
                    .reshape(B_pad, N_pad, k))[:B]
    dots = jnp.sum(V_final * V_final[:, 0:1, :], axis=-1)                # (B, N_pad)
    z_out = jnp.arccos(jnp.clip(-dots, -1.0, 1.0)) / math.pi
    return z_out[:, 1:n + 1]


# ----------------------------------------------------------------------------------
# SATConvTranspose forward.
# ----------------------------------------------------------------------------------
def sat_conv_transpose_forward(S, x_in, mask_img=None, mask=None, *,
                               out_n, aux, init_key, max_iter=40):
    """x_in: (B, in_n) f32.  Returns (B, out_n) f32, matching the torch module."""
    B, in_n = x_in.shape
    if mask is None:
        mask = jnp.zeros((B, out_n), dtype=jnp.int32)
    mask_full = jnp.concatenate(
        [mask.astype(jnp.int32), jnp.ones((B, in_n), dtype=jnp.int32)], axis=-1)
    head = jnp.zeros((B, out_n), x_in.dtype) if mask_img is None else mask_img
    z = jnp.concatenate([head, x_in], axis=-1)                           # (B, out_n+in_n)
    out = satnet_forward(S, z, mask_full, aux=aux, init_key=init_key,
                         max_iter=max_iter)                              # (B, out_n+in_n)
    return out[:, :out_n]


# ----------------------------------------------------------------------------------
if __name__ == "__main__":
    # small shapes: in_n=16, out_n=16, m=64 clauses, aux=7 auxiliary vars
    B, in_n, out_n, m, aux = 8, 16, 16, 64, 7
    n_sat = in_n + out_n
    N = n_sat + 1 + aux          # 40 SAT variables (truth + outputs + inputs + aux)

    key = jax.random.PRNGKey(0)
    k_x, k_S, k_init = jax.random.split(key, 3)

    x_in = jax.random.uniform(k_x, (B, in_n), dtype=jnp.float32)
    # SATNet parameter S ~ standard normal, shape (in_n + out_n + 1 + aux, m)
    S = jax.random.normal(k_S, (N, m), dtype=jnp.float32)

    out = sat_conv_transpose_forward(S, x_in, out_n=out_n, aux=aux, init_key=k_init)
    out = jax.block_until_ready(out)

    assert out.shape == (B, out_n), out.shape
    assert bool(jnp.all(jnp.isfinite(out)))
    assert bool(jnp.all((out >= -1e-5) & (out <= 1.0 + 1e-5)))
    print("KERNEL_OK")
</pallas_src>

<mosaic_0001>
module attributes {stable_mosaic.version = 11 : i64} {
  func.func @_mixing_kernel(%arg0: i32, %arg1: memref<2x40xi32, #tpu.memory_space<smem>>, %arg2: memref<2xi32, #tpu.memory_space<smem>>, %arg3: memref<40x128xf32, #tpu.memory_space<vmem>>, %arg4: memref<40x128xf32, #tpu.memory_space<vmem>>, %arg5: memref<40x40xf32, #tpu.memory_space<vmem>>, %arg6: memref<40x128xf32, #tpu.memory_space<vmem>>, %arg7: memref<40x128xf32, #tpu.memory_space<vmem>>, %arg8: memref<40x128xf32, #tpu.memory_space<vmem>>) attributes {dimension_semantics = [#tpu.dimension_semantics<parallel>], iteration_bounds = array<i64: 2>, scalar_prefetch = 2 : i64, scratch_operands = 1 : i64, tpu.core_type = #tpu.core_type<tc>, window_params = [{transform_indices = @transform_0, window_bounds = array<i64: 40, 128>}, {transform_indices = @transform_1, window_bounds = array<i64: 40, 128>}, {pipeline_mode = #tpu.pipeline_mode<synchronous>, transform_indices = @transform_2, window_bounds = array<i64: 40, 40>}, {transform_indices = @transform_3, window_bounds = array<i64: 40, 128>}, {transform_indices = @transform_4, window_bounds = array<i64: 40, 128>}]} {
    %c0 = arith.constant 0 : index
    %c0_0 = arith.constant 0 : index
    %0 = vector.load %arg3[%c0, %c0_0] : memref<40x128xf32, #tpu.memory_space<vmem>>, vector<40x128xf32>
    %c0_1 = arith.constant 0 : index
    %c0_2 = arith.constant 0 : index
    %1 = vector.load %arg7[%c0_1, %c0_2] : memref<40x128xf32, #tpu.memory_space<vmem>>, vector<40x128xf32>
    tpu.vector_store %arg7[%c0_1, %c0_2], %0 {strides = array<i32>} : memref<40x128xf32, #tpu.memory_space<vmem>>, vector<40x128xf32>,
    %c0_3 = arith.constant 0 : index
    %c0_4 = arith.constant 0 : index
    %2 = vector.load %arg4[%c0_3, %c0_4] : memref<40x128xf32, #tpu.memory_space<vmem>>, vector<40x128xf32>
    %c0_5 = arith.constant 0 : index
    %c0_6 = arith.constant 0 : index
    %3 = vector.load %arg8[%c0_5, %c0_6] : memref<40x128xf32, #tpu.memory_space<vmem>>, vector<40x128xf32>
    tpu.vector_store %arg8[%c0_5, %c0_6], %2 {strides = array<i32>} : memref<40x128xf32, #tpu.memory_space<vmem>>, vector<40x128xf32>,
    %c0_7 = arith.constant 0 : index
    %c0_8 = arith.constant 0 : index
    %4 = vector.load %arg5[%c0_7, %c0_8] : memref<40x40xf32, #tpu.memory_space<vmem>>, vector<40x40xf32>
    %5 = tpu.iota {dimensions = array<i32: 1>} : vector<40x40xi32>
    %6 = arith.index_cast %arg0 : i32 to index
    %7 = memref.load %arg2[%6] : memref<2xi32, #tpu.memory_space<smem>>
    %c0_i32 = arith.constant 0 : i32
    %c0_i32_9 = arith.constant 0 : i32
    %c40_i32 = arith.constant 40 : i32
    %8 = arith.addi %c0_i32_9, %c40_i32 : i32
    %c1_i32 = arith.constant 1 : i32
    scf.for %arg9 = %c0_i32_9 to %8 step %c1_i32  : i32 {
      %c0_i32_10 = arith.constant 0 : i32
      %9 = arith.subi %7, %c0_i32_10 : i32
      %10 = arith.addi %c0_i32_10, %9 : i32
      %c1_i32_11 = arith.constant 1 : i32
      scf.for %arg10 = %c0_i32_10 to %10 step %c1_i32_11  : i32 {
        %11 = arith.index_cast %arg0 : i32 to index
        %12 = arith.index_cast %arg10 : i32 to index
        %13 = memref.load %arg1[%11, %12] : memref<2x40xi32, #tpu.memory_space<smem>>
        %14 = arith.index_cast %13 : i32 to index
        %c0_12 = arith.constant 0 : index
        %15 = vector.load %arg8[%14, %c0_12] : memref<40x128xf32, #tpu.memory_space<vmem>>, vector<1x128xf32>
        %16 = arith.mulf %15, %15 : vector<1x128xf32>
        %c4_i32 = arith.constant 4 : i32
        %17 = tpu.dynamic_rotate %16 by %c4_i32 dim 1 : vector<1x128xf32>, i32 -> vector<1x128xf32>
        %18 = arith.addf %16, %17 : vector<1x128xf32>
        %c8_i32 = arith.constant 8 : i32
        %19 = tpu.dynamic_rotate %18 by %c8_i32 dim 1 : vector<1x128xf32>, i32 -> vector<1x128xf32>
        %20 = arith.addf %18, %19 : vector<1x128xf32>
        %c16_i32 = arith.constant 16 : i32
        %21 = tpu.dynamic_rotate %20 by %c16_i32 dim 1 : vector<1x128xf32>, i32 -> vector<1x128xf32>
        %22 = arith.addf %20, %21 : vector<1x128xf32>
        %c32_i32 = arith.constant 32 : i32
        %23 = tpu.dynamic_rotate %22 by %c32_i32 dim 1 : vector<1x128xf32>, i32 -> vector<1x128xf32>
        %24 = arith.addf %22, %23 : vector<1x128xf32>
        %c64_i32 = arith.constant 64 : i32
        %25 = tpu.dynamic_rotate %24 by %c64_i32 dim 1 : vector<1x128xf32>, i32 -> vector<1x128xf32>
        %26 = arith.addf %24, %25 : vector<1x128xf32>
        %cst = arith.constant 0.000000e+00 : f32
        %27 = vector.broadcast %cst : f32 to vector<1x128xf32>
        %28 = arith.subf %27, %15 : vector<1x128xf32>
        %cst_13 = arith.constant 1.000000e-30 : f32
        %29 = vector.broadcast %cst_13 : f32 to vector<1x128xf32>
        %30 = arith.maximumf %26, %29 : vector<1x128xf32>
        %31 = math.rsqrt %30 : vector<1x128xf32>
        %32 = arith.mulf %28, %31 : vector<1x128xf32>
        %33 = arith.index_cast %13 : i32 to index
        %c0_14 = arith.constant 0 : index
        %34 = vector.load %arg7[%33, %c0_14] : memref<40x128xf32, #tpu.memory_space<vmem>>, vector<1x128xf32>
        %35 = arith.index_cast %13 : i32 to index
        %c0_15 = arith.constant 0 : index
        %36 = vector.load %arg6[%35, %c0_15] : memref<40x128xf32, #tpu.memory_space<vmem>>, vector<1x128xf32>
        %cst_16 = arith.constant 0.000000e+00 : f32
        %37 = vector.broadcast %cst_16 : f32 to vector<1x128xf32>
        %38 = arith.cmpf ogt, %36, %37 : vector<1x128xf32>
        %cst_17 = arith.constant 9.99999968E-21 : f32
        %39 = vector.broadcast %cst_17 : f32 to vector<1x128xf32>
        %40 = arith.cmpf ogt, %26, %39 : vector<1x128xf32>
        %41 = arith.andi %38, %40 : vector<1x128xi1>
        %42 = arith.select %41, %32, %34 : vector<1x128xi1>, vector<1x128xf32>
        %43 = arith.index_cast %13 : i32 to index
        %c0_18 = arith.constant 0 : index
        %44 = vector.load %arg7[%43, %c0_18] : memref<40x128xf32, #tpu.memory_space<vmem>>, vector<1x128xf32>
        tpu.vector_store %arg7[%43, %c0_18], %42 {strides = array<i32>} : memref<40x128xf32, #tpu.memory_space<vmem>>, vector<1x128xf32>,
        %45 = arith.subf %42, %34 : vector<1x128xf32>
        %46 = vector.broadcast %13 : i32 to vector<40x40xi32>
        %47 = arith.cmpi eq, %5, %46 : vector<40x40xi32>
        %cst_19 = arith.constant 0.000000e+00 : f32
        %48 = vector.broadcast %cst_19 : f32 to vector<40x40xf32>
        %49 = arith.select %47, %4, %48 : vector<40x40xi1>, vector<40x40xf32>
        %cst_20 = arith.constant dense<0.000000e+00> : vector<40xf32>
        %50 = vector.multi_reduction <add>, %49, %cst_20 [1] : vector<40x40xf32> to vector<40xf32>
        %51 = vector.shape_cast %50 : vector<40xf32> to vector<40x1xf32>
        %c0_21 = arith.constant 0 : index
        %c0_22 = arith.constant 0 : index
        %52 = vector.load %arg8[%c0_21, %c0_22] : memref<40x128xf32, #tpu.memory_space<vmem>>, vector<40x128xf32>
        %53 = vector.broadcast %51 : vector<40x1xf32> to vector<40x128xf32>
        %54 = vector.broadcast %45 : vector<1x128xf32> to vector<40x128xf32>
        %55 = arith.mulf %53, %54 : vector<40x128xf32>
        %56 = arith.addf %52, %55 : vector<40x128xf32>
        %c0_23 = arith.constant 0 : index
        %c0_24 = arith.constant 0 : index
        %57 = vector.load %arg8[%c0_23, %c0_24] : memref<40x128xf32, #tpu.memory_space<vmem>>, vector<40x128xf32>
        tpu.vector_store %arg8[%c0_23, %c0_24], %56 {strides = array<i32>} : memref<40x128xf32, #tpu.memory_space<vmem>>, vector<40x128xf32>,
      }
    }
    return
  }
  func.func @transform_0(%arg0: i32, %arg1: memref<2x40xi32, #tpu.memory_space<smem>>, %arg2: memref<2xi32, #tpu.memory_space<smem>>) -> (i32, i32) {
    %c0_i32 = arith.constant 0 : i32
    %c0_i32_0 = arith.constant 0 : i32
    return %arg0, %c0_i32 : i32, i32
  }
  func.func @transform_1(%arg0: i32, %arg1: memref<2x40xi32, #tpu.memory_space<smem>>, %arg2: memref<2xi32, #tpu.memory_space<smem>>) -> (i32, i32) {
    %c0_i32 = arith.constant 0 : i32
    %c0_i32_0 = arith.constant 0 : i32
    return %arg0, %c0_i32 : i32, i32
  }
  func.func @transform_2(%arg0: i32, %arg1: memref<2x40xi32, #tpu.memory_space<smem>>, %arg2: memref<2xi32, #tpu.memory_space<smem>>) -> (i32, i32) {
    %c0_i32 = arith.constant 0 : i32
    %c0_i32_0 = arith.constant 0 : i32
    %c0_i32_1 = arith.constant 0 : i32
    return %c0_i32, %c0_i32_0 : i32, i32
  }
  func.func @transform_3(%arg0: i32, %arg1: memref<2x40xi32, #tpu.memory_space<smem>>, %arg2: memref<2xi32, #tpu.memory_space<smem>>) -> (i32, i32) {
    %c0_i32 = arith.constant 0 : i32
    %c0_i32_0 = arith.constant 0 : i32
    return %arg0, %c0_i32 : i32, i32
  }
  func.func @transform_4(%arg0: i32, %arg1: memref<2x40xi32, #tpu.memory_space<smem>>, %arg2: memref<2xi32, #tpu.memory_space<smem>>) -> (i32, i32) {
    %c0_i32 = arith.constant 0 : i32
    %c0_i32_0 = arith.constant 0 : i32
    return %arg0, %c0_i32 : i32, i32
  }
}

</mosaic_0001>

<llo_original>
// kernel: tpu_custom_call.1
$region0: #{tpu_custom_call.1}
  #allocation0 [shape = 'u32[]', space=smem, size = 0x4, offset = 0x4, fixed_abs, tag = 'smem constant byte address 0x4 - core index']
  #allocation1 [shape = 'u32[144,128]{1,0:T(1,128)}', space=vmem, size = 0x12000, scoped, tag = 'internal scratch']
  #allocation2 [shape = 'f32[40,128]{1,0:T(8,128)}', space=vmem, size = 0x5000, scoped, tag = 'scratch operand']
  #allocation3 [shape = 's32[1]{0}', space=sflag, size = 0x4, scoped, tag = 'scoped memory for tpu_custom_call.1']
  #allocation4 [shape = 'u8[1024]{0}', space=smem, size = 0x400, scoped, tag = 'prefetched SMEM operand 0']
  #allocation5 [shape = 'u8[512]{0}', space=smem, size = 0x200, scoped, tag = 'prefetched SMEM operand 1']
  %s0 = inlined_call_operand.hbm [shape: s32[2,40], index: 0, kind: input, shape index: {}]
  %s1 = inlined_call_operand.vmem [shape: s32[2], index: 1, kind: input, shape index: {}]
  %s2 = inlined_call_operand.hbm [shape: f32[80,128], index: 2, kind: input, shape index: {}]
  %s3 = inlined_call_operand.hbm [shape: f32[80,128], index: 3, kind: input, shape index: {}]
  %s4 = inlined_call_operand.hbm [shape: f32[40,40], index: 4, kind: input, shape index: {}]
  %s5 = inlined_call_operand.hbm [shape: f32[80,128], index: 5, kind: input, shape index: {}]
  %s6 = inlined_call_operand.hbm [shape: f32[80,128], index: 6, kind: output, shape index: {}]
  %s7 = sld [smem:[#allocation0]]
  $region79: #{tpu_custom_call.1} parent=0
    _
  %s9 = ssub.s32 1, %s7
  %s10 = scalar_select 0, %s9, %s7
  %12 = dma.hbm_to_smem %s0, 32, [#allocation4], [#allocation3]
  %s13 = sshll.u32 %s1, 4
  %s14 = int_to_ptr.vmem [resolvable:$true] %s13
  %16 = dma.vmem_to_smem %s14, 16, [#allocation5], [#allocation3]
  %17 = dma.done [#allocation3], 48
  %18 = sfence
  $region1: #{tpu_custom_call.1} parent=0
    #allocation6 [shape = 'u8[40960]{0}', space=vmem, size = 0xa000, scoped, tag = 'input window, operand 2']
    #allocation7 [shape = 's32[2]{0}', space=sflag, size = 0x8, scoped, tag = 'scoped memory for tpu_custom_call.1']
    #allocation8 [shape = 's32[2]{0}', space=sflag, size = 0x8, scoped, tag = 'scoped memory for tpu_custom_call.1']
    #allocation9 [shape = 'u8[40960]{0}', space=vmem, size = 0xa000, scoped, tag = 'input window, operand 3']
    #allocation10 [shape = 's32[2]{0}', space=sflag, size = 0x8, scoped, tag = 'scoped memory for tpu_custom_call.1']
    #allocation11 [shape = 'u8[20480]{0}', space=vmem, size = 0x5000, scoped, tag = 'input window, operand 4, single buffered']
    #allocation12 [shape = 'u8[40960]{0}', space=vmem, size = 0xa000, scoped, tag = 'input window, operand 5']
    #allocation13 [shape = 's32[2]{0}', space=sflag, size = 0x8, scoped, tag = 'scoped memory for tpu_custom_call.1']
    #allocation14 [shape = 'u8[40960]{0}', space=vmem, size = 0xa000, scoped, tag = 'output window, operand 0']
    %19 = vsyncpa [#allocation7], 0
    %s20 = scalar_lea.sflag [#allocation7], 1
    %21 = vsyncpa %s20, 0
    %22 = vsyncpa [#allocation10], 0
    %s23 = scalar_lea.sflag [#allocation10], 1
    %24 = vsyncpa %s23, 0
    %25 = vsyncpa [#allocation13], 0
    %s26 = scalar_lea.sflag [#allocation13], 1
    %27 = vsyncpa %s26, 0
    %28 = vsyncpa [#allocation8], 0
    %s29 = scalar_lea.sflag [#allocation8], 1
    %30 = vsyncpa %s29, 0
    loop: start=0, step=1, limit=4
    $region2: #{tpu_custom_call.1} parent=1 // loop_pre_header
      _
    $region3: #{tpu_custom_call.1} parent=1 // loop_header
      %s32 = sphi 0, %s36
      %p33 = scmp.ge.s32.totalorder %s32, 4
      %s42 = sphi 0, %s44
      %s45 = sphi 0, %s42
      %s46 = sphi 0, %s45
      %s62 = sphi 0, %s46
      %s68 = sphi 0, %s70
      %s71 = sphi 0, %s68
      %s72 = sphi 0, %s71
      %s88 = sphi 0, %s72
      %s92 = sphi 0, %s92
      %s94 = sphi 0, %s92
      %s95 = sphi 0, %s94
      %s109 = sphi 0, %s95
      %s115 = sphi 0, %s117
      %s118 = sphi 0, %s115
      %s119 = sphi 0, %s118
      %s135 = sphi 0, %s119
      %s141 = sphi 0, %s143
      %s144 = sphi 0, %s141
      %s145 = sphi 0, %s144
      %s161 = sphi 0, %s145
    $region4: #{tpu_custom_call.1} parent=1 // loop_header_branch
      %35 = sbr.rel (%p33) target = $region8
    $region5: #{tpu_custom_call.1} parent=1 // loop_body
      %s37 = ssub.s32 %s32, 1
      %s38 = ssub.s32 %s32, 2
      %s39 = sadd.s32 %s32, 1
      %s40 = ssub.s32 %s32, %s39
      %p41 = scmp.eq.s32.totalorder %s40, 0
      %s43 = sadd.s32 %s42, 1
      %s44 = scalar_select %p41, %s42, %s43
      %p47 = pneg %p41
      %p48 = scmp.eq.s32.totalorder %s32, 1
      %p49 = por %p47, %p48
      %p50 = scmp.ne.s32.totalorder %s42, %s45
      %p51 = scmp.eq.s32.totalorder %s32, 0
      %p52 = por %p50, %p51
      %p53 = scmp.ne.s32.totalorder %s42, %s45
      %p54 = scmp.eq.s32.totalorder %s37, 1
      %p55 = por %p53, %p54
      %p56 = scmp.ne.s32.totalorder %s45, %s46
      %p57 = scmp.eq.s32.totalorder %s37, 0
      %p58 = por %p56, %p57
      %p59 = scmp.ne.s32.totalorder %s45, %s46
      %p60 = scmp.eq.s32.totalorder %s38, 1
      %p61 = por %p59, %p60
      %p63 = scmp.ne.s32.totalorder %s46, %s62
      %p64 = scmp.eq.s32.totalorder %s38, 0
      %p65 = por %p63, %p64
      %s66 = ssub.s32 %s32, %s39
      %p67 = scmp.eq.s32.totalorder %s66, 0
      %s69 = sadd.s32 %s68, 1
      %s70 = scalar_select %p67, %s68, %s69
      %p73 = pneg %p67
      %p74 = scmp.eq.s32.totalorder %s32, 1
      %p75 = por %p73, %p74
      %p76 = scmp.ne.s32.totalorder %s68, %s71
      %p77 = scmp.eq.s32.totalorder %s32, 0
      %p78 = por %p76, %p77
      %p79 = scmp.ne.s32.totalorder %s68, %s71
      %p80 = scmp.eq.s32.totalorder %s37, 1
      %p81 = por %p79, %p80
      %p82 = scmp.ne.s32.totalorder %s71, %s72
      %p83 = scmp.eq.s32.totalorder %s37, 0
      %p84 = por %p82, %p83
      %p85 = scmp.ne.s32.totalorder %s71, %s72
      %p86 = scmp.eq.s32.totalorder %s38, 1
      %p87 = por %p85, %p86
      %p89 = scmp.ne.s32.totalorder %s72, %s88
      %p90 = scmp.eq.s32.totalorder %s38, 0
      %p91 = por %p89, %p90
      %s93 = sadd.s32 %s92, 1
      %p96 = scmp.eq.s32.totalorder %s32, 1
      %p97 = scmp.ne.s32.totalorder %s92, %s94
      %p98 = scmp.eq.s32.totalorder %s32, 0
      %p99 = por %p97, %p98
      %p100 = scmp.ne.s32.totalorder %s92, %s94
      %p101 = scmp.eq.s32.totalorder %s37, 1
      %p102 = por %p100, %p101
      %p103 = scmp.ne.s32.totalorder %s94, %s95
      %p104 = scmp.eq.s32.totalorder %s37, 0
      %p105 = por %p103, %p104
      %p106 = scmp.ne.s32.totalorder %s94, %s95
      %p107 = scmp.eq.s32.totalorder %s38, 1
      %p108 = por %p106, %p107
      %p110 = scmp.ne.s32.totalorder %s95, %s109
      %p111 = scmp.eq.s32.totalorder %s38, 0
      %p112 = por %p110, %p111
      %s113 = ssub.s32 %s32, %s39
      %p114 = scmp.eq.s32.totalorder %s113, 0
      %s116 = sadd.s32 %s115, 1
      %s117 = scalar_select %p114, %s115, %s116
      %p120 = pneg %p114
      %p121 = scmp.eq.s32.totalorder %s32, 1
      %p122 = por %p120, %p121
      %p123 = scmp.ne.s32.totalorder %s115, %s118
      %p124 = scmp.eq.s32.totalorder %s32, 0
      %p125 = por %p123, %p124
      %p126 = scmp.ne.s32.totalorder %s115, %s118
      %p127 = scmp.eq.s32.totalorder %s37, 1
      %p128 = por %p126, %p127
      %p129 = scmp.ne.s32.totalorder %s118, %s119
      %p130 = scmp.eq.s32.totalorder %s37, 0
      %p131 = por %p129, %p130
      %p132 = scmp.ne.s32.totalorder %s118, %s119
      %p133 = scmp.eq.s32.totalorder %s38, 1
      %p134 = por %p132, %p133
      %p136 = scmp.ne.s32.totalorder %s119, %s135
      %p137 = scmp.eq.s32.totalorder %s38, 0
      %p138 = por %p136, %p137
      %s139 = ssub.s32 %s32, %s39
      %p140 = scmp.eq.s32.totalorder %s139, 0
      %s142 = sadd.s32 %s141, 1
      %s143 = scalar_select %p140, %s141, %s142
      %p146 = pneg %p140
      %p147 = scmp.eq.s32.totalorder %s32, 1
      %p148 = por %p146, %p147
      %p149 = scmp.ne.s32.totalorder %s141, %s144
      %p150 = scmp.eq.s32.totalorder %s32, 0
      %p151 = por %p149, %p150
      %p152 = scmp.ne.s32.totalorder %s141, %s144
      %p153 = scmp.eq.s32.totalorder %s37, 1
      %p154 = por %p152, %p153
      %p155 = scmp.ne.s32.totalorder %s144, %s145
      %p156 = scmp.eq.s32.totalorder %s37, 0
      %p157 = por %p155, %p156
      %p158 = scmp.ne.s32.totalorder %s144, %s145
      %p159 = scmp.eq.s32.totalorder %s38, 1
      %p160 = por %p158, %p159
      %p162 = scmp.ne.s32.totalorder %s145, %s161
      %p163 = scmp.eq.s32.totalorder %s38, 0
      %p164 = por %p162, %p163
      %p165 = scmp.le.s32.totalorder 1, %s32
      %p166 = scmp.lt.s32.totalorder %s32, 3
      %p167 = pnand %p165, %p166
      %p168 = pneg %p167
      // Predicated region
      $region9: #{tpu_custom_call.1} parent=5 // pred_check
        _
      $region10: #{tpu_custom_call.1} parent=5 // pred_check_branch
        %170 = sbr.rel (%p167) target = $region12
      $region11: #{tpu_custom_call.1} parent=5 // pred_region
        %s171 = ssub.s32 %s32, 1
        // Predicated region
        $region13: #{tpu_custom_call.1} parent=11 // pred_check
          %p172 = pneg %p105
        $region14: #{tpu_custom_call.1} parent=11 // pred_check_branch
          %174 = sbr.rel (%p172) target = $region16
        $region15: #{tpu_custom_call.1} parent=11 // pred_region
          %s176 = ssub.s32 640, 640
          %177 = vsyncadd [#allocation10], %s176
          %s178 = sshll.u32 [#allocation11], 4
          %s179 = int_to_ptr.vmem [resolvable:$true] %s178
          %184 = dma.hbm_to_vmem [thread:$0]  %s4, 640, %s179, [#allocation10], 128, 128, 8
        $region16: #{tpu_custom_call.1} parent=11 // pred_fallthru
          _
      $region12: #{tpu_custom_call.1} parent=5 // pred_fallthru
        _
      %p185 = scmp.lt.s32.totalorder %s32, 2
      // Predicated region
      $region17: #{tpu_custom_call.1} parent=5 // pred_check
        %p186 = pneg %p185
      $region18: #{tpu_custom_call.1} parent=5 // pred_check_branch
        %188 = sbr.rel (%p186) target = $region20
      $region19: #{tpu_custom_call.1} parent=5 // pred_region
        // Predicated region
        $region21: #{tpu_custom_call.1} parent=19 // pred_check
          %p189 = pneg %p52
        $region22: #{tpu_custom_call.1} parent=19 // pred_check_branch
          %191 = sbr.rel (%p189) target = $region24
        $region23: #{tpu_custom_call.1} parent=19 // pred_region
          %s192 = sand.u32 %s42, 1
          %s193 = scalar_lea.sflag [#allocation7], %s192
          %s194 = sand.u32 %s42, 1
          %s195 = smul.addr %s194, 40
          %s196 = scalar_lea.vmem [#allocation6], %s195
          %s197 = smul.u32 5, %s32
          %s199 = ssub.s32 640, 640
          %200 = vsyncadd %s193, %s199
          %s201 = smul.addr %s197, 128
          %s202 = scalar_lea.hbm %s2, %s201
          %s203 = sshll.u32 %s196, 4
          %s204 = int_to_ptr.vmem [resolvable:$true] %s203
          %209 = dma.hbm_to_vmem [thread:$0]  %s202, 640, %s204, %s193, 128, 128, 8
        $region24: #{tpu_custom_call.1} parent=19 // pred_fallthru
          _
        // Predicated region
        $region25: #{tpu_custom_call.1} parent=19 // pred_check
          %p210 = pneg %p78
        $region26: #{tpu_custom_call.1} parent=19 // pred_check_branch
          %212 = sbr.rel (%p210) target = $region28
        $region27: #{tpu_custom_call.1} parent=19 // pred_region
          %s213 = sand.u32 %s32, 1
          %s214 = scalar_lea.sflag [#allocation10], %s213
          %s215 = sand.u32 %s68, 1
          %s216 = smul.addr %s215, 40
          %s217 = scalar_lea.vmem [#allocation9], %s216
          %s218 = smul.u32 5, %s32
          %s220 = ssub.s32 640, 640
          %221 = vsyncadd %s214, %s220
          %s222 = smul.addr %s218, 128
          %s223 = scalar_lea.hbm %s3, %s222
          %s224 = sshll.u32 %s217, 4
          %s225 = int_to_ptr.vmem [resolvable:$true] %s224
          %230 = dma.hbm_to_vmem [thread:$0]  %s223, 640, %s225, %s214, 128, 128, 8
        $region28: #{tpu_custom_call.1} parent=19 // pred_fallthru
          _
        // Predicated region
        $region29: #{tpu_custom_call.1} parent=19 // pred_check
          %p231 = pneg %p125
        $region30: #{tpu_custom_call.1} parent=19 // pred_check_branch
          %233 = sbr.rel (%p231) target = $region32
        $region31: #{tpu_custom_call.1} parent=19 // pred_region
          %s234 = sand.u32 %s115, 1
          %s235 = scalar_lea.sflag [#allocation13], %s234
          %s236 = sand.u32 %s115, 1
          %s237 = smul.addr %s236, 40
          %s238 = scalar_lea.vmem [#allocation12], %s237
          %s239 = smul.u32 5, %s32
          %s241 = ssub.s32 640, 640
          %242 = vsyncadd %s235, %s241
          %s243 = smul.addr %s239, 128
          %s244 = scalar_lea.hbm %s5, %s243
          %s245 = sshll.u32 %s238, 4
          %s246 = int_to_ptr.vmem [resolvable:$true] %s245
          %251 = dma.hbm_to_vmem [thread:$0]  %s244, 640, %s246, %s235, 128, 128, 8
        $region32: #{tpu_custom_call.1} parent=19 // pred_fallthru
          _
      $region20: #{tpu_custom_call.1} parent=5 // pred_fallthru
        _
      %p252 = scmp.le.s32.totalorder 1, %s32
      %p253 = scmp.lt.s32.totalorder %s32, 3
      %p254 = pnand %p252, %p253
      %p255 = pneg %p254
      // Predicated region
      $region33: #{tpu_custom_call.1} parent=5 // pred_check
        _
      $region34: #{tpu_custom_call.1} parent=5 // pred_check_branch
        %257 = sbr.rel (%p254) target = $region36
      $region35: #{tpu_custom_call.1} parent=5 // pred_region
        %s258 = ssub.s32 %s32, 1
        %s259 = sand.u32 %s45, 1
        %s260 = scalar_lea.sflag [#allocation7], %s259
        %s261 = sand.u32 %s45, 1
        %s262 = smul.addr %s261, 40
        %s263 = scalar_lea.vmem [#allocation6], %s262
        // Predicated region
        $region37: #{tpu_custom_call.1} parent=35 // pred_check
          %p264 = pneg %p58
        $region38: #{tpu_custom_call.1} parent=35 // pred_check_branch
          %266 = sbr.rel (%p264) target = $region40
        $region39: #{tpu_custom_call.1} parent=35 // pred_region
          %267 = dma.done %s260, 640
        $region40: #{tpu_custom_call.1} parent=35 // pred_fallthru
          _
        %s268 = sand.u32 %s37, 1
        %s269 = scalar_lea.sflag [#allocation10], %s268
        %s270 = sand.u32 %s71, 1
        %s271 = smul.addr %s270, 40
        %s272 = scalar_lea.vmem [#allocation9], %s271
        // Predicated region
        $region41: #{tpu_custom_call.1} parent=35 // pred_check
          %p273 = pneg %p84
        $region42: #{tpu_custom_call.1} parent=35 // pred_check_branch
          %275 = sbr.rel (%p273) target = $region44
        $region43: #{tpu_custom_call.1} parent=35 // pred_region
          %276 = dma.done %s269, 640
        $region44: #{tpu_custom_call.1} parent=35 // pred_fallthru
          _
        // Predicated region
        $region45: #{tpu_custom_call.1} parent=35 // pred_check
          %p277 = pneg %p105
        $region46: #{tpu_custom_call.1} parent=35 // pred_check_branch
          %279 = sbr.rel (%p277) target = $region48
        $region47: #{tpu_custom_call.1} parent=35 // pred_region
          %280 = dma.done [#allocation10], 640
        $region48: #{tpu_custom_call.1} parent=35 // pred_fallthru
          _
        %s281 = sand.u32 %s118, 1
        %s282 = scalar_lea.sflag [#allocation13], %s281
        %s283 = sand.u32 %s118, 1
        %s284 = smul.addr %s283, 40
        %s285 = scalar_lea.vmem [#allocation12], %s284
        // Predicated region
        $region49: #{tpu_custom_call.1} parent=35 // pred_check
          %p286 = pneg %p131
        $region50: #{tpu_custom_call.1} parent=35 // pred_check_branch
          %288 = sbr.rel (%p286) target = $region52
        $region51: #{tpu_custom_call.1} parent=35 // pred_region
          %289 = dma.done %s282, 640
        $region52: #{tpu_custom_call.1} parent=35 // pred_fallthru
          _
        %s290 = sand.u32 %s45, 1
        %s291 = scalar_lea.sflag [#allocation7], %s290
        %s292 = sand.u32 %s45, 1
        %s293 = smul.addr %s292, 40
        %s294 = scalar_lea.vmem [#allocation6], %s293
        %p295 = pneg %p58
        %p296 = pneg %p55
        %s297 = sand.u32 %s37, 1
        %s298 = scalar_lea.sflag [#allocation10], %s297
        %s299 = sand.u32 %s71, 1
        %s300 = smul.addr %s299, 40
        %s301 = scalar_lea.vmem [#allocation9], %s300
        %p302 = pneg %p84
        %p303 = pneg %p81
        %p304 = pneg %p105
        %p305 = pneg %p102
        %s306 = sand.u32 %s118, 1
        %s307 = scalar_lea.sflag [#allocation13], %s306
        %s308 = sand.u32 %s118, 1
        %s309 = smul.addr %s308, 40
        %s310 = scalar_lea.vmem [#allocation12], %s309
        %p311 = pneg %p131
        %p312 = pneg %p128
        %p313 = pneg %p157
        %p314 = pneg %p154
        %s315 = sand.u32 %s144, 1
        %s316 = scalar_lea.sflag [#allocation8], %s315
        %s317 = sand.u32 %s144, 1
        %s318 = smul.addr %s317, 40
        %s319 = scalar_lea.vmem [#allocation14], %s318
        %s320 = smul.u32 5, %s37
        %s321 = smul.u32 5, %s37
        %s322 = smul.u32 5, %s37
        %s323 = smul.u32 5, %s37
        %v324 = vld [vmem:[%s263] sm:$0xff]
        %v325 = vld [vmem:[%s263 + $0x8] sm:$0xff]
        %v326 = vld [vmem:[%s263 + $0x10] sm:$0xff]
        %v327 = vld [vmem:[%s263 + $0x18] sm:$0xff]
        %v328 = vld [vmem:[%s263 + $0x20] sm:$0xff]
        %329 = vst [vmem:[%s319] sm:$0xff] %v324
        %330 = vst [vmem:[%s319 + $0x8] sm:$0xff] %v325
        %331 = vst [vmem:[%s319 + $0x10] sm:$0xff] %v326
        %332 = vst [vmem:[%s319 + $0x18] sm:$0xff] %v327
        %333 = vst [vmem:[%s319 + $0x20] sm:$0xff] %v328
        %v334 = vld [vmem:[%s272] sm:$0xff]
        %v335 = vld [vmem:[%s272 + $0x8] sm:$0xff]
        %v336 = vld [vmem:[%s272 + $0x10] sm:$0xff]
        %v337 = vld [vmem:[%s272 + $0x18] sm:$0xff]
        %v338 = vld [vmem:[%s272 + $0x20] sm:$0xff]
        %339 = vst [vmem:[#allocation2] sm:$0xff] %v334
        %340 = vst [vmem:[#allocation2 + $0x8] sm:$0xff] %v335
        %341 = vst [vmem:[#allocation2 + $0x10] sm:$0xff] %v336
        %342 = vst [vmem:[#allocation2 + $0x18] sm:$0xff] %v337
        %343 = vst [vmem:[#allocation2 + $0x20] sm:$0xff] %v338
        %v344 = vld [vmem:[#allocation11] sm:$0xff]
        %v345 = vld [vmem:[#allocation11 + $0x8] sm:$0xff]
        %v346 = vld [vmem:[#allocation11 + $0x10] sm:$0xff]
        %v347 = vld [vmem:[#allocation11 + $0x18] sm:$0xff]
        %v348 = vld [vmem:[#allocation11 + $0x20] sm:$0xff]
        %v349 = vlaneseq
        %v350 = vand.u32 %v349, 127
        %s351 = sld [smem:[#allocation5 + %s37]]
        loop: start=0, step=1, limit=40
        $region53: #{tpu_custom_call.1} parent=35 // loop_pre_header
          _
        $region54: #{tpu_custom_call.1} parent=35 // loop_header
          %s353 = sphi 0, %s357
          %p354 = scmp.ge.s32.totalorder %s353, 40
        $region55: #{tpu_custom_call.1} parent=35 // loop_header_branch
          %356 = sbr.rel (%p354) target = $region59
        $region56: #{tpu_custom_call.1} parent=35 // loop_body
          // While loop
          $region60: #{tpu_custom_call.1} parent=56 // loop_pre_header
            _
          $region61: #{tpu_custom_call.1} parent=56 // loop_header
            %s359 = sphi 0, %s361
            %p360 = scmp.ge.s32.totalorder %s359, %s351
          $region62: #{tpu_custom_call.1} parent=56 // loop_header_branch
            %363 = sbr.rel (%p360) target = $region66
          $region63: #{tpu_custom_call.1} parent=56 // loop_body
            %s364 = sshra.s32 %s359, 7
            %s365 = sand.u32 %s359, 127
            %s366 = sadd.s32 %s364, %s37
            %s367 = smul.u32 %s366, 128
            %s368 = sshra.s32 %s359, 7
            %s369 = sand.u32 %s359, 127
            %s370 = sadd.s32 %s367, %s369
            %s371 = sld [smem:[#allocation4 + %s370]]
            %s372 = scalar_lea.vmem [#allocation2], %s371
            %v373 = vld [vmem:[%s372] sm:$0x1]
            %v374 = vmul.f32 %v373, %v373
            %375 = vrot.lane.b32.xlu0 %v374, 4
            %v376 = vpop.permute.xlu0 %375
            %v377 = vadd.f32 %v374, %v376
            %378 = vrot.lane.b32.xlu0 %v377, 8
            %v379 = vpop.permute.xlu0 %378
            %v380 = vadd.f32 %v377, %v379
            %381 = vrot.lane.b32.xlu0 %v380, 16
            %v382 = vpop.permute.xlu0 %381
            %v383 = vadd.f32 %v380, %v382
            %384 = vrot.lane.b32.xlu0 %v383, 32
            %v385 = vpop.permute.xlu0 %384
            %v386 = vadd.f32 %v383, %v385
            %387 = vrot.lane.b32.xlu0 %v386, 64
            %v388 = vpop.permute.xlu0 %387
            %v389 = vadd.f32 %v386, %v388
            %v390 = vsub.f32 0.0, %v373
            %v391 = vmax.f32 %v389, 1e-30
            %v392 = vrsqrt.pop %v391
            %v393 = vmul.f32 %v390, %v392
            %s394 = scalar_lea.vmem %s319, %s371 [#allocation14]
            %v395 = vld [vmem:[%s394] sm:$0x1]
            %s396 = scalar_lea.vmem %s285, %s371 [#allocation12]
            %v397 = vld [vmem:[%s396] sm:$0x1]
            %vm398 = vcmp.gt.f32.partialorder %v397, 0.0
            %vm399 = vcmp.gt.f32.partialorder %v389, 1e-20
            %vm400 = vmand %vm398, %vm399
            %v401 = vsel %vm400, %v393, %v395
            %402 = vst [vmem:[%s394] sm:$0x1] %v401
            %v403 = vsub.f32 %v401, %v395
            %v404 = vstv %s371
            %vm405 = vcmp.eq.s32.totalorder %v350, %v404
            %v406 = vsel %vm405, %v344, 0.0
            %v407 = vsel %vm405, %v345, 0.0
            %v408 = vsel %vm405, %v346, 0.0
            %v409 = vsel %vm405, %v347, 0.0
            %v410 = vsel %vm405, %v348, 0.0
            %vm411 = vcmask 326656
            %v412 = vsel %vm411, %v406, 0.0
            %413 = vadd.xlane.f32.xlu0 %v412
            %v414 = vpop.xlane.xlu0 %413
            %v415 = vsel %vm411, %v407, 0.0
            %416 = vadd.xlane.f32.xlu0 %v415
            %v417 = vpop.xlane.xlu0 %416
            %v418 = vsel %vm411, %v408, 0.0
            %419 = vadd.xlane.f32.xlu0 %v418
            %v420 = vpop.xlane.xlu0 %419
            %v421 = vsel %vm411, %v409, 0.0
            %422 = vadd.xlane.f32.xlu0 %v421
            %v423 = vpop.xlane.xlu0 %422
            %v424 = vsel %vm411, %v410, 0.0
            %425 = vadd.xlane.f32.xlu0 %v424
            %v426 = vpop.xlane.xlu0 %425
            %v427 = vld [vmem:[#allocation2] sm:$0xff]
            %v428 = vld [vmem:[#allocation2 + $0x8] sm:$0xff]
            %v429 = vld [vmem:[#allocation2 + $0x10] sm:$0xff]
            %v430 = vld [vmem:[#allocation2 + $0x18] sm:$0xff]
            %v431 = vld [vmem:[#allocation2 + $0x20] sm:$0xff]
            %v432 = vlaneseq
            %v433 = vshrl.u32 %v432, 7
            %v434 = vsub.s32 0, %v433
            %v435 = vrot.slane %v403, %v434
            %v436 = vmul.f32 %v414, %v435
            %v437 = vmul.f32 %v417, %v435
            %v438 = vmul.f32 %v420, %v435
            %v439 = vmul.f32 %v423, %v435
            %v440 = vmul.f32 %v426, %v435
            %v441 = vadd.f32 %v427, %v436
            %v442 = vadd.f32 %v428, %v437
            %v443 = vadd.f32 %v429, %v438
            %v444 = vadd.f32 %v430, %v439
            %v445 = vadd.f32 %v431, %v440
            %446 = vst [vmem:[#allocation2] sm:$0xff] %v441
            %447 = vst [vmem:[#allocation2 + $0x8] sm:$0xff] %v442
            %448 = vst [vmem:[#allocation2 + $0x10] sm:$0xff] %v443
            %449 = vst [vmem:[#allocation2 + $0x18] sm:$0xff] %v444
            %450 = vst [vmem:[#allocation2 + $0x20] sm:$0xff] %v445
          $region64: #{tpu_custom_call.1} parent=56 // loop_footer
            %s361 = sadd.s32 %s359, 1
          $region65: #{tpu_custom_call.1} parent=56 // loop_footer_branch
            %358 = sbr.rel target = $region61
          $region66: #{tpu_custom_call.1} parent=56 // loop_exit
            _
        $region57: #{tpu_custom_call.1} parent=35 // loop_footer
          %s357 = sadd.s32 1, %s353
        $region58: #{tpu_custom_call.1} parent=35 // loop_footer_branch
          %352 = sbr.rel target = $region54
        $region59: #{tpu_custom_call.1} parent=35 // loop_exit
          _
        %s451 = sand.u32 %s144, 1
        %s452 = scalar_lea.sflag [#allocation8], %s451
        %s453 = sand.u32 %s144, 1
        %s454 = smul.addr %s453, 40
        %s455 = scalar_lea.vmem [#allocation14], %s454
        // Predicated region
        $region67: #{tpu_custom_call.1} parent=35 // pred_check
          %p456 = pneg %p154
        $region68: #{tpu_custom_call.1} parent=35 // pred_check_branch
          %458 = sbr.rel (%p456) target = $region70
        $region69: #{tpu_custom_call.1} parent=35 // pred_region
          %s459 = smul.u32 5, %s37
          %s461 = ssub.s32 640, 640
          %462 = vsyncadd %s452, %s461
          %s463 = smul.addr %s459, 128
          %s464 = scalar_lea.hbm %s6, %s463
          %s465 = sshll.u32 %s455, 4
          %s466 = int_to_ptr.vmem [resolvable:$true] %s465
          %471 = dma.vmem_to_hbm [thread:$0]  %s466, 640, %s464, %s452, 128, 128, 8
        $region70: #{tpu_custom_call.1} parent=35 // pred_fallthru
          _
      $region36: #{tpu_custom_call.1} parent=5 // pred_fallthru
        _
      %p472 = scmp.le.s32.totalorder 2, %s32
      // Predicated region
      $region71: #{tpu_custom_call.1} parent=5 // pred_check
        %p473 = pneg %p472
      $region72: #{tpu_custom_call.1} parent=5 // pred_check_branch
        %475 = sbr.rel (%p473) target = $region74
      $region73: #{tpu_custom_call.1} parent=5 // pred_region
        %s476 = ssub.s32 %s32, 2
        // Predicated region
        $region75: #{tpu_custom_call.1} parent=73 // pred_check
          %p477 = pneg %p160
        $region76: #{tpu_custom_call.1} parent=73 // pred_check_branch
          %479 = sbr.rel (%p477) target = $region78
        $region77: #{tpu_custom_call.1} parent=73 // pred_region
          %s480 = sand.u32 %s145, 1
          %s481 = scalar_lea.sflag [#allocation8], %s480
          %s482 = sand.u32 %s145, 1
          %s483 = smul.addr %s482, 40
          %s484 = scalar_lea.vmem [#allocation14], %s483
          %485 = dma.done %s481, 640
        $region78: #{tpu_custom_call.1} parent=73 // pred_fallthru
          _
      $region74: #{tpu_custom_call.1} parent=5 // pred_fallthru
        _
    $region6: #{tpu_custom_call.1} parent=1 // loop_footer
      %s36 = sadd.s32 1, %s32
    $region7: #{tpu_custom_call.1} parent=1 // loop_footer_branch
      %31 = sbr.rel target = $region3
    $region8: #{tpu_custom_call.1} parent=1 // loop_exit
      _
    %486 = vsyncpa [#allocation7], 1
    %s487 = scalar_lea.sflag [#allocation7], 1
    %488 = vsyncpa %s487, 1
    %489 = vsyncpa [#allocation10], 1
    %s490 = scalar_lea.sflag [#allocation10], 1
    %491 = vsyncpa %s490, 1
    %492 = vsyncpa [#allocation13], 1
    %s493 = scalar_lea.sflag [#allocation13], 1
    %494 = vsyncpa %s493, 1
    %495 = vsyncpa [#allocation8], 1
    %s496 = scalar_lea.sflag [#allocation8], 1
    %497 = vsyncpa %s496, 1

</llo_original>
